<compile_context>
chip_gen: v6e
topology: v6e:2x2x1
jax: 0.10.0
libtpu: 0.0.40
codegen_flags: <defaults>
</compile_context>

<pallas_src>
import jax
import jax.numpy as jnp
from jax.experimental import pallas as pl
from jax.experimental.pallas import tpu as pltpu

_EPS = 1e-10
_LANE = 128
_SUBLANE = 8
_VMEM_INPUT_BUDGET = 8 * 1024 * 1024    # 2 inputs x 2 pipeline buffers per step
_MIN_BLOCK_BYTES = 512 * 1024           # keep blocks big enough to amortize step cost
_TARGET_STEPS = 8                       # aim for ~8 pipelined grid steps
_MIN_STEPS = 4                          # at least 2 steps per v7x TensorCore
_FAST_PATH_BYTES = 256 * 1024           # below this, fused jnp beats a kernel launch


def _round_up(x, m):
    return ((x + m - 1) // m) * m


def _js_kernel(p_ref, q_ref, o_ref):
    """Blocks are (T, C): rows on sublanes, classes on lanes (full C per block)."""
    p = p_ref[...].astype(jnp.float32)
    q = q_ref[...].astype(jnp.float32)
    m = (p + q) * 0.5
    lm = jnp.log(m + _EPS)
    lp = jnp.log(p + _EPS)
    lq = jnp.log(q + _EPS)
    # 0.5*KL(p||m) + 0.5*KL(q||m): shared log(m) (3 logs total) and a single
    # fused lane-axis reduce.
    js = 0.5 * jnp.sum(p * (lp - lm) + q * (lq - lm), axis=1, keepdims=True)
    # TODO(synk): a lane-dense (1, T) store (sublane->lane relayout of the
    # (T, 1) result) would avoid masked vst.msk stores (mostly a v5e concern),
    # but that relayout is not reliably lowered; keep the proven (T, 1) layout.
    o_ref[...] = js.astype(o_ref.dtype)


def _js_fused(p, q):
    """Fused pure-jnp path for tiny problems (same math as the kernel)."""
    p32 = p.astype(jnp.float32)
    q32 = q.astype(jnp.float32)
    m = (p32 + q32) * 0.5
    lm = jnp.log(m + _EPS)
    return 0.5 * jnp.sum(
        p32 * (jnp.log(p32 + _EPS) - lm) + q32 * (jnp.log(q32 + _EPS) - lm),
        axis=1,
    )


def jensen_shannon(p, q, *, force_pallas=False):
    """Jensen-Shannon divergence.  p, q: (N, C) row-distributions -> (N,) f32."""
    assert p.shape == q.shape and p.ndim == 2
    N, C = p.shape
    itemsize = max(jnp.dtype(p.dtype).itemsize, jnp.dtype(q.dtype).itemsize)

    # Tiny problems: the Pallas launch dominates; use the fused XLA expression.
    if not force_pallas and N * C * itemsize < _FAST_PATH_BYTES:
        return _js_fused(p, q)

    # ---- row-tile selection -------------------------------------------------
    c_pad = _round_up(C, _LANE)                      # VMEM lane padding of (T, C)
    max_rows = (_VMEM_INPUT_BUDGET // (4 * c_pad * itemsize))   # 2 inputs x 2 bufs
    max_rows = max(_SUBLANE, (max_rows // _SUBLANE) * _SUBLANE)
    floor_rows = _round_up(
        max(_MIN_BLOCK_BYTES // (c_pad * itemsize), _SUBLANE), _SUBLANE)
    want_rows = _round_up(int(pl.cdiv(N, _TARGET_STEPS)), _SUBLANE)

    row_tile = max(want_rows, floor_rows)
    # Ensure at least _MIN_STEPS grid steps when there is enough data.
    row_tile = min(row_tile, _round_up(int(pl.cdiv(N, _MIN_STEPS)), _SUBLANE))
    row_tile = min(row_tile, max_rows)
    row_tile = max(row_tile, _SUBLANE)
    if row_tile >= N:
        row_tile = N                                 # single full-array block
    row_tile = int(row_tile)
    steps = int(pl.cdiv(N, row_tile))                # last block may be partial

    # TODO(synk): optionally pipeline_mode=pl.Buffered(3) on the input specs
    # (a few % at large N on v7x); kept off to stay on the proven code path.
    in_spec = pl.BlockSpec((row_tile, C), lambda i: (i, 0))
    out_spec = pl.BlockSpec((row_tile, 1), lambda i: (i, 0))

    cost = pl.CostEstimate(
        flops=8 * N * C,
        transcendentals=3 * N * C,
        bytes_accessed=2 * N * C * itemsize + N * 4,
    )

    out = pl.pallas_call(
        _js_kernel,
        out_shape=jax.ShapeDtypeStruct((N, 1), jnp.float32),
        grid_spec=pltpu.PrefetchScalarGridSpec(
            num_scalar_prefetch=0,
            grid=(steps,),
            in_specs=[in_spec, in_spec],
            out_specs=out_spec,
        ),
        compiler_params=pltpu.CompilerParams(
            dimension_semantics=("parallel",),
            vmem_limit_bytes=32 * 1024 * 1024,
        ),
        cost_estimate=cost,
    )(p, q)
    return out[:, 0]


def _jensen_shannon_ref(p, q):
    """Direct transcription of the PyTorch module (eps inside the ratio)."""
    p = p.astype(jnp.float32)
    q = q.astype(jnp.float32)
    m = (p + q) / 2.0
    kl = lambda a, b: jnp.sum(a * jnp.log((a + _EPS) / (b + _EPS)), axis=1)
    return 0.5 * kl(p, m) + 0.5 * kl(q, m)


if __name__ == "__main__":
    key = jax.random.PRNGKey(0)
    k1, k2, k3, k4 = jax.random.split(key, 4)

    # CIFAR-style case (batch=64, classes=10).  Default call takes the fused
    # fast path; force_pallas exercises the kernel (4 grid steps of (16, 10)).
    N1, C1 = 64, 10
    p1 = jax.nn.softmax(jax.random.normal(k1, (N1, C1), dtype=jnp.float32), axis=1)
    q1 = jax.nn.softmax(jax.random.normal(k2, (N1, C1), dtype=jnp.float32), axis=1)
    ref1 = _jensen_shannon_ref(p1, q1)
    out_fast = jax.block_until_ready(jensen_shannon(p1, q1))
    out_pal = jax.block_until_ready(jensen_shannon(p1, q1, force_pallas=True))
    assert out_fast.shape == (N1,) and out_pal.shape == (N1,)
    assert jnp.allclose(out_fast, ref1, atol=1e-5, rtol=1e-5)
    assert jnp.allclose(out_pal, ref1, atol=1e-5, rtol=1e-5)

    # Larger case: takes the Pallas path by default; N is not a multiple of the
    # row tile, exercising the clipped partial boundary block (no host pad).
    N2, C2 = 1000, 128
    p2 = jax.nn.softmax(jax.random.normal(k3, (N2, C2), dtype=jnp.float32), axis=1)
    q2 = jax.nn.softmax(jax.random.normal(k4, (N2, C2), dtype=jnp.float32), axis=1)
    out2 = jax.block_until_ready(jensen_shannon(p2, q2))
    ref2 = _jensen_shannon_ref(p2, q2)
    assert out2.shape == (N2,)
    assert jnp.allclose(out2, ref2, atol=1e-5, rtol=1e-5)

    print("KERNEL_OK")
</pallas_src>

<mosaic_0001>
module attributes {stable_mosaic.version = 11 : i64} {
  func.func @_js_kernel(%arg0: i32, %arg1: memref<16x10xf32, #tpu.memory_space<vmem>>, %arg2: memref<16x10xf32, #tpu.memory_space<vmem>>, %arg3: memref<16x1xf32, #tpu.memory_space<vmem>>) attributes {dimension_semantics = [#tpu.dimension_semantics<parallel>], iteration_bounds = array<i64: 4>, scalar_prefetch = 0 : i64, scratch_operands = 0 : i64, tpu.core_type = #tpu.core_type<tc>, window_params = [{transform_indices = @transform_0, window_bounds = array<i64: 16, 10>}, {transform_indices = @transform_1, window_bounds = array<i64: 16, 10>}, {transform_indices = @transform_2, window_bounds = array<i64: 16, 1>}]} {
    %c0 = arith.constant 0 : index
    %c0_0 = arith.constant 0 : index
    %0 = vector.load %arg1[%c0, %c0_0] : memref<16x10xf32, #tpu.memory_space<vmem>>, vector<16x10xf32>
    %c0_1 = arith.constant 0 : index
    %c0_2 = arith.constant 0 : index
    %1 = vector.load %arg2[%c0_1, %c0_2] : memref<16x10xf32, #tpu.memory_space<vmem>>, vector<16x10xf32>
    %2 = arith.addf %0, %1 : vector<16x10xf32>
    %cst = arith.constant 5.000000e-01 : f32
    %3 = vector.broadcast %cst : f32 to vector<16x10xf32>
    %4 = arith.mulf %2, %3 : vector<16x10xf32>
    %cst_3 = arith.constant 1.000000e-10 : f32
    %5 = vector.broadcast %cst_3 : f32 to vector<16x10xf32>
    %6 = arith.addf %4, %5 : vector<16x10xf32>
    %7 = math.log %6 : vector<16x10xf32>
    %cst_4 = arith.constant 1.000000e-10 : f32
    %8 = vector.broadcast %cst_4 : f32 to vector<16x10xf32>
    %9 = arith.addf %0, %8 : vector<16x10xf32>
    %10 = math.log %9 : vector<16x10xf32>
    %cst_5 = arith.constant 1.000000e-10 : f32
    %11 = vector.broadcast %cst_5 : f32 to vector<16x10xf32>
    %12 = arith.addf %1, %11 : vector<16x10xf32>
    %13 = math.log %12 : vector<16x10xf32>
    %14 = arith.subf %10, %7 : vector<16x10xf32>
    %15 = arith.mulf %0, %14 : vector<16x10xf32>
    %16 = arith.subf %13, %7 : vector<16x10xf32>
    %17 = arith.mulf %1, %16 : vector<16x10xf32>
    %18 = arith.addf %15, %17 : vector<16x10xf32>
    %cst_6 = arith.constant dense<0.000000e+00> : vector<16xf32>
    %19 = vector.multi_reduction <add>, %18, %cst_6 [1] : vector<16x10xf32> to vector<16xf32>
    %20 = vector.shape_cast %19 : vector<16xf32> to vector<16x1xf32>
    %cst_7 = arith.constant 5.000000e-01 : f32
    %21 = vector.broadcast %cst_7 : f32 to vector<16x1xf32>
    %22 = arith.mulf %21, %20 : vector<16x1xf32>
    %c0_8 = arith.constant 0 : index
    %c0_9 = arith.constant 0 : index
    %23 = vector.load %arg3[%c0_8, %c0_9] : memref<16x1xf32, #tpu.memory_space<vmem>>, vector<16x1xf32>
    tpu.vector_store %arg3[%c0_8, %c0_9], %22 {strides = array<i32>} : memref<16x1xf32, #tpu.memory_space<vmem>>, vector<16x1xf32>,
    return
  }
  func.func @transform_0(%arg0: i32) -> (i32, i32) {
    %c0_i32 = arith.constant 0 : i32
    %c0_i32_0 = arith.constant 0 : i32
    return %arg0, %c0_i32 : i32, i32
  }
  func.func @transform_1(%arg0: i32) -> (i32, i32) {
    %c0_i32 = arith.constant 0 : i32
    %c0_i32_0 = arith.constant 0 : i32
    return %arg0, %c0_i32 : i32, i32
  }
  func.func @transform_2(%arg0: i32) -> (i32, i32) {
    %c0_i32 = arith.constant 0 : i32
    %c0_i32_0 = arith.constant 0 : i32
    return %arg0, %c0_i32 : i32, i32
  }
}

</mosaic_0001>

<llo_original>
// kernel: tpu_custom_call.1
$region0: #{tpu_custom_call.1}
  #allocation0 [shape = 'u32[]', space=smem, size = 0x4, offset = 0x4, fixed_abs, tag = 'smem constant byte address 0x4 - core index']
  #allocation1 [shape = 'u32[144,128]{1,0:T(1,128)}', space=vmem, size = 0x12000, scoped, tag = 'internal scratch']
  %s0 = inlined_call_operand.vmem [shape: f32[64,10], index: 0, kind: input, shape index: {}]
  %s1 = inlined_call_operand.vmem [shape: f32[64,10], index: 1, kind: input, shape index: {}]
  %s2 = inlined_call_operand.vmem [shape: f32[64,1], index: 2, kind: output, shape index: {}]
  %s3 = sld [smem:[#allocation0]]
  $region41: #{tpu_custom_call.1} parent=0
    _
  %s5 = ssub.s32 1, %s3
  %s6 = scalar_select 0, %s5, %s3
  loop: start=0, step=1, limit=6
  $region2: #{tpu_custom_call.1} parent=0 // loop_pre_header
    _
  $region3: #{tpu_custom_call.1} parent=0 // loop_header
    %s8 = sphi 0, %s12
    %p9 = scmp.ge.s32.totalorder %s8, 6
    %s18 = sphi 0, %s20
    %s21 = sphi 0, %s18
    %s22 = sphi 0, %s21
    %s38 = sphi 0, %s22
    %s44 = sphi 0, %s46
    %s47 = sphi 0, %s44
    %s48 = sphi 0, %s47
    %s64 = sphi 0, %s48
    %s70 = sphi 0, %s72
    %s73 = sphi 0, %s70
    %s74 = sphi 0, %s73
    %s90 = sphi 0, %s74
  $region4: #{tpu_custom_call.1} parent=0 // loop_header_branch
    %11 = sbr.rel (%p9) target = $region8
  $region5: #{tpu_custom_call.1} parent=0 // loop_body
    %s13 = ssub.s32 %s8, 1
    %s14 = ssub.s32 %s8, 2
    %s15 = sadd.s32 %s8, 1
    %s16 = ssub.s32 %s8, %s15
    %p17 = scmp.eq.s32.totalorder %s16, 0
    %s19 = sadd.s32 %s18, 1
    %s20 = scalar_select %p17, %s18, %s19
    %p23 = pneg %p17
    %p24 = scmp.eq.s32.totalorder %s8, 3
    %p25 = por %p23, %p24
    %p26 = scmp.ne.s32.totalorder %s18, %s21
    %p27 = scmp.eq.s32.totalorder %s8, 0
    %p28 = por %p26, %p27
    %p29 = scmp.ne.s32.totalorder %s18, %s21
    %p30 = scmp.eq.s32.totalorder %s13, 3
    %p31 = por %p29, %p30
    %p32 = scmp.ne.s32.totalorder %s21, %s22
    %p33 = scmp.eq.s32.totalorder %s13, 0
    %p34 = por %p32, %p33
    %p35 = scmp.ne.s32.totalorder %s21, %s22
    %p36 = scmp.eq.s32.totalorder %s14, 3
    %p37 = por %p35, %p36
    %p39 = scmp.ne.s32.totalorder %s22, %s38
    %p40 = scmp.eq.s32.totalorder %s14, 0
    %p41 = por %p39, %p40
    %s42 = ssub.s32 %s8, %s15
    %p43 = scmp.eq.s32.totalorder %s42, 0
    %s45 = sadd.s32 %s44, 1
    %s46 = scalar_select %p43, %s44, %s45
    %p49 = pneg %p43
    %p50 = scmp.eq.s32.totalorder %s8, 3
    %p51 = por %p49, %p50
    %p52 = scmp.ne.s32.totalorder %s44, %s47
    %p53 = scmp.eq.s32.totalorder %s8, 0
    %p54 = por %p52, %p53
    %p55 = scmp.ne.s32.totalorder %s44, %s47
    %p56 = scmp.eq.s32.totalorder %s13, 3
    %p57 = por %p55, %p56
    %p58 = scmp.ne.s32.totalorder %s47, %s48
    %p59 = scmp.eq.s32.totalorder %s13, 0
    %p60 = por %p58, %p59
    %p61 = scmp.ne.s32.totalorder %s47, %s48
    %p62 = scmp.eq.s32.totalorder %s14, 3
    %p63 = por %p61, %p62
    %p65 = scmp.ne.s32.totalorder %s48, %s64
    %p66 = scmp.eq.s32.totalorder %s14, 0
    %p67 = por %p65, %p66
    %s68 = ssub.s32 %s8, %s15
    %p69 = scmp.eq.s32.totalorder %s68, 0
    %s71 = sadd.s32 %s70, 1
    %s72 = scalar_select %p69, %s70, %s71
    %p75 = pneg %p69
    %p76 = scmp.eq.s32.totalorder %s8, 3
    %p77 = por %p75, %p76
    %p78 = scmp.ne.s32.totalorder %s70, %s73
    %p79 = scmp.eq.s32.totalorder %s8, 0
    %p80 = por %p78, %p79
    %p81 = scmp.ne.s32.totalorder %s70, %s73
    %p82 = scmp.eq.s32.totalorder %s13, 3
    %p83 = por %p81, %p82
    %p84 = scmp.ne.s32.totalorder %s73, %s74
    %p85 = scmp.eq.s32.totalorder %s13, 0
    %p86 = por %p84, %p85
    %p87 = scmp.ne.s32.totalorder %s73, %s74
    %p88 = scmp.eq.s32.totalorder %s14, 3
    %p89 = por %p87, %p88
    %p91 = scmp.ne.s32.totalorder %s74, %s90
    %p92 = scmp.eq.s32.totalorder %s14, 0
    %p93 = por %p91, %p92
    %p94 = scmp.le.s32.totalorder 1, %s8
    %p95 = scmp.lt.s32.totalorder %s8, 5
    %p96 = pnand %p94, %p95
    %p97 = pneg %p96
    // Predicated region
    $region9: #{tpu_custom_call.1} parent=5 // pred_check
      _
    $region10: #{tpu_custom_call.1} parent=5 // pred_check_branch
      %99 = sbr.rel (%p96) target = $region12
    $region11: #{tpu_custom_call.1} parent=5 // pred_region
      %s100 = ssub.s32 %s8, 1
    $region12: #{tpu_custom_call.1} parent=5 // pred_fallthru
      _
    %p101 = scmp.lt.s32.totalorder %s8, 4
    // Predicated region
    $region13: #{tpu_custom_call.1} parent=5 // pred_check
      %p102 = pneg %p101
    $region14: #{tpu_custom_call.1} parent=5 // pred_check_branch
      %104 = sbr.rel (%p102) target = $region16
    $region15: #{tpu_custom_call.1} parent=5 // pred_region
      // Predicated region
      $region17: #{tpu_custom_call.1} parent=15 // pred_check
        %p105 = pneg %p28
      $region18: #{tpu_custom_call.1} parent=15 // pred_check_branch
        %107 = sbr.rel (%p105) target = $region20
      $region19: #{tpu_custom_call.1} parent=15 // pred_region
        %s108 = smul.u32 2, %s8
        %p109 = scmp.lt.s32.totalorder %s108, 7
        %s110 = scalar_select %p109, %s108, 7
        %s111 = smul.addr %s110, 8
        %s112 = scalar_lea.vmem %s0, %s111
        %s113 = smul.u32 2, %s8
      $region20: #{tpu_custom_call.1} parent=15 // pred_fallthru
        _
      // Predicated region
      $region21: #{tpu_custom_call.1} parent=15 // pred_check
        %p114 = pneg %p54
      $region22: #{tpu_custom_call.1} parent=15 // pred_check_branch
        %116 = sbr.rel (%p114) target = $region24
      $region23: #{tpu_custom_call.1} parent=15 // pred_region
        %s117 = smul.u32 2, %s8
        %p118 = scmp.lt.s32.totalorder %s117, 7
        %s119 = scalar_select %p118, %s117, 7
        %s120 = smul.addr %s119, 8
        %s121 = scalar_lea.vmem %s1, %s120
        %s122 = smul.u32 2, %s8
      $region24: #{tpu_custom_call.1} parent=15 // pred_fallthru
        _
    $region16: #{tpu_custom_call.1} parent=5 // pred_fallthru
      _
    %p123 = scmp.le.s32.totalorder 1, %s8
    %p124 = scmp.lt.s32.totalorder %s8, 5
    %p125 = pnand %p123, %p124
    %p126 = pneg %p125
    // Predicated region
    $region25: #{tpu_custom_call.1} parent=5 // pred_check
      _
    $region26: #{tpu_custom_call.1} parent=5 // pred_check_branch
      %128 = sbr.rel (%p125) target = $region28
    $region27: #{tpu_custom_call.1} parent=5 // pred_region
      %s129 = ssub.s32 %s8, 1
      %s130 = smul.u32 2, %s13
      %p131 = scmp.lt.s32.totalorder %s130, 7
      %s132 = scalar_select %p131, %s130, 7
      %s133 = smul.addr %s132, 8
      %s134 = scalar_lea.vmem %s0, %s133
      %p135 = pneg %p34
      %p136 = pneg %p31
      %s137 = smul.u32 2, %s13
      %p138 = scmp.lt.s32.totalorder %s137, 7
      %s139 = scalar_select %p138, %s137, 7
      %s140 = smul.addr %s139, 8
      %s141 = scalar_lea.vmem %s1, %s140
      %p142 = pneg %p60
      %p143 = pneg %p57
      %p144 = pneg %p86
      %p145 = pneg %p83
      %s146 = smul.u32 2, %s13
      %p147 = scmp.lt.s32.totalorder %s146, 7
      %s148 = scalar_select %p147, %s146, 7
      %s149 = smul.addr %s148, 8
      %s150 = scalar_lea.vmem %s2, %s149
      %s151 = smul.u32 2, %s13
      %p152 = scmp.lt.s32.totalorder %s151, 7
      %s153 = scalar_select %p152, %s151, 7
      %s154 = smul.addr %s153, 8
      %s155 = scalar_lea.vmem %s0, %s154
      %s156 = smul.u32 2, %s13
      %s157 = smul.u32 2, %s13
      %p158 = scmp.lt.s32.totalorder %s157, 7
      %s159 = scalar_select %p158, %s157, 7
      %s160 = smul.addr %s159, 8
      %s161 = scalar_lea.vmem %s1, %s160
      %s162 = smul.u32 2, %s13
      %s163 = smul.u32 2, %s13
      %p164 = scmp.lt.s32.totalorder %s163, 7
      %s165 = scalar_select %p164, %s163, 7
      %s166 = smul.addr %s165, 8
      %s167 = scalar_lea.vmem %s2, %s166
      %s168 = smul.u32 2, %s13
      %v169 = vld [vmem:[%s155] sm:$0xff]
      %v170 = vld [vmem:[%s155 + $0x8] sm:$0xff]
      %v171 = vld [vmem:[%s161] sm:$0xff]
      %v172 = vld [vmem:[%s161 + $0x8] sm:$0xff]
      %v173 = vadd.f32 %v169, %v171
      %v174 = vadd.f32 %v170, %v172
      %v175 = vmul.f32 %v173, 0.5
      %v176 = vmul.f32 %v174, 0.5
      %v177 = vadd.f32 %v175, 1e-10
      %v178 = vadd.f32 %v176, 1e-10
      %v179 = vlog2.pop %v177
      %v180 = vmul.f32 %v179, 0.6931472
      %v181 = vlog2.pop %v178
      %v182 = vmul.f32 %v181, 0.6931472
      %v183 = vadd.f32 %v169, 1e-10
      %v184 = vadd.f32 %v170, 1e-10
      %v185 = vlog2.pop %v183
      %v186 = vmul.f32 %v185, 0.6931472
      %v187 = vlog2.pop %v184
      %v188 = vmul.f32 %v187, 0.6931472
      %v189 = vadd.f32 %v171, 1e-10
      %v190 = vadd.f32 %v172, 1e-10
      %v191 = vlog2.pop %v189
      %v192 = vmul.f32 %v191, 0.6931472
      %v193 = vlog2.pop %v190
      %v194 = vmul.f32 %v193, 0.6931472
      %v195 = vsub.f32 %v186, %v180
      %v196 = vsub.f32 %v188, %v182
      %v197 = vmul.f32 %v169, %v195
      %v198 = vmul.f32 %v170, %v196
      %v199 = vsub.f32 %v192, %v180
      %v200 = vsub.f32 %v194, %v182
      %v201 = vmul.f32 %v171, %v199
      %v202 = vmul.f32 %v172, %v200
      %v203 = vadd.f32 %v197, %v201
      %v204 = vadd.f32 %v198, %v202
      %vm205 = vcmask 80896
      %v206 = vsel %vm205, %v203, 0.0
      %207 = vadd.xlane.f32.xlu0 %v206
      %v208 = vpop.xlane.xlu0 %207
      %v209 = vsel %vm205, %v204, 0.0
      %210 = vadd.xlane.f32.xlu0 %v209
      %v211 = vpop.xlane.xlu0 %210
      %v212 = vmul.f32 %v208, 0.5
      %v213 = vmul.f32 %v211, 0.5
      %vm214 = vcmask 7168
      %215 = vst.msk [vmem:[%s167] sm:$0xff] %vm214, %v212
      %216 = vst.msk [vmem:[%s167 + $0x8] sm:$0xff] %vm214, %v213
      %s217 = smul.u32 2, %s13
      %p218 = scmp.lt.s32.totalorder %s217, 7
      %s219 = scalar_select %p218, %s217, 7
      %s220 = smul.addr %s219, 8
      %s221 = scalar_lea.vmem %s2, %s220
      // Predicated region
      $region29: #{tpu_custom_call.1} parent=27 // pred_check
        %p222 = pneg %p83
      $region30: #{tpu_custom_call.1} parent=27 // pred_check_branch
        %224 = sbr.rel (%p222) target = $region32
      $region31: #{tpu_custom_call.1} parent=27 // pred_region
        %s225 = smul.u32 2, %s13
      $region32: #{tpu_custom_call.1} parent=27 // pred_fallthru
        _
    $region28: #{tpu_custom_call.1} parent=5 // pred_fallthru
      _
    %p226 = scmp.le.s32.totalorder 2, %s8
    // Predicated region
    $region33: #{tpu_custom_call.1} parent=5 // pred_check
      %p227 = pneg %p226
    $region34: #{tpu_custom_call.1} parent=5 // pred_check_branch
      %229 = sbr.rel (%p227) target = $region36
    $region35: #{tpu_custom_call.1} parent=5 // pred_region
      %s230 = ssub.s32 %s8, 2
      // Predicated region
      $region37: #{tpu_custom_call.1} parent=35 // pred_check
        %p231 = pneg %p89
      $region38: #{tpu_custom_call.1} parent=35 // pred_check_branch
        %233 = sbr.rel (%p231) target = $region40
      $region39: #{tpu_custom_call.1} parent=35 // pred_region
        %s234 = smul.u32 2, %s14
        %p235 = scmp.lt.s32.totalorder %s234, 7
        %s236 = scalar_select %p235, %s234, 7
        %s237 = smul.addr %s236, 8
        %s238 = scalar_lea.vmem %s2, %s237
      $region40: #{tpu_custom_call.1} parent=35 // pred_fallthru
        _
    $region36: #{tpu_custom_call.1} parent=5 // pred_fallthru
      _
  $region6: #{tpu_custom_call.1} parent=0 // loop_footer
    %s12 = sadd.s32 1, %s8
  $region7: #{tpu_custom_call.1} parent=0 // loop_footer_branch
    %7 = sbr.rel target = $region3
  $region8: #{tpu_custom_call.1} parent=0 // loop_exit
    _

</llo_original>
